<compile_context>
chip_gen: v7x
topology: tpu7x:2x2x1
jax: 0.10.0
libtpu: 0.0.40
codegen_flags: <defaults>
</compile_context>

<pallas_src>
import functools

import jax
import jax.numpy as jnp
from jax.experimental import pallas as pl
from jax.experimental.pallas import tpu as pltpu

HIDDEN = 32
LANE = 128


def _round_up(n, m):
    return ((n + m - 1) // m) * m


# ----------------------------------------------------------------------------
# Kernel: three lane-dense matmuls, no reductions, no stream combine.
# ----------------------------------------------------------------------------
def dueling_kernel(x_ref, w_ref, b_ref, out_ref, *, width, num_actions):
    H = HIDDEN
    W = width

    x = x_ref[...]                                # (TB, 32)

    # Static, tile-aligned row slices of the packed weight slab.
    w1 = w_ref[0:H, :]                            # (32, W)  fc1 (cols >=32 are zero)
    ws1 = w_ref[H:H + W, :]                       # (W, W)   [fcV1 | fcA1] fused
    ws2 = w_ref[H + W:H + 2 * W, :]               # (W, W)   [fcV2 bcast ; centered fcA2]

    b1 = b_ref[0:1, :]
    bs1 = b_ref[1:2, :]
    bs2 = b_ref[2:3, :]

    # fc1 + ReLU (padded lanes stay exactly zero).
    h = jnp.maximum(jnp.dot(x, w1, preferred_element_type=jnp.float32) + b1, 0.0)
    # Fused value/advantage hidden layer: cols 0:32 = fcV1(h), cols 32:64 = fcA1(h).
    s1 = jnp.dot(h, ws1, preferred_element_type=jnp.float32) + bs1
    # Fused output: V broadcast over actions + centered advantage, bias included.
    o = jnp.dot(s1, ws2, preferred_element_type=jnp.float32) + bs2

    out_ref[...] = o[:, :num_actions].astype(out_ref.dtype)


# ----------------------------------------------------------------------------
# Wrapper
# ----------------------------------------------------------------------------
def advantage_finance_net_forward(x, packed, num_actions):
    """x: (B, 32) f32.  packed: (w_slab (32+2W, W), b_slab (3, W)) from pack_params."""
    w_slab, b_slab = packed
    B = x.shape[0]
    W = w_slab.shape[1]
    NA = num_actions

    # Batch tiling: one block for small B, 512-row blocks (multiple of 8) otherwise.
    TB = B if B <= 512 else 512
    grid = (pl.cdiv(B, TB),)

    kernel = functools.partial(dueling_kernel, width=W, num_actions=NA)

    return pl.pallas_call(
        kernel,
        out_shape=jax.ShapeDtypeStruct((B, NA), jnp.float32),
        grid=grid,
        in_specs=[
            pl.BlockSpec((TB, HIDDEN), lambda i: (i, 0)),       # x: tiled over batch
            pl.BlockSpec(w_slab.shape, lambda i: (0, 0)),       # weights: resident
            pl.BlockSpec(b_slab.shape, lambda i: (0, 0)),       # biases: resident
        ],
        out_specs=pl.BlockSpec((TB, NA), lambda i: (i, 0)),
        compiler_params=pltpu.CompilerParams(
            dimension_semantics=("parallel",)),
    )(x, w_slab, b_slab)


# ----------------------------------------------------------------------------
# Host-side parameter packing (one-time cost, algebraically exact folds)
# ----------------------------------------------------------------------------
def pack_params(p, num_actions):
    H = HIDDEN
    NA = num_actions
    W = max(LANE, _round_up(NA, LANE))            # padded lane width (128 for small NA)

    # Fold the dueling mean into the advantage head:
    #   A - mean(A) = a1 @ (wa2 - mean(wa2, axis=1)) + (ba2 - mean(ba2))
    wa2c = p["wa2"] - p["wa2"].mean(axis=1, keepdims=True)     # (H, NA)
    ba2c = p["ba2"] - p["ba2"].mean(axis=1, keepdims=True)     # (1, NA)

    # fc1, padded to W output lanes (padding columns produce exact zeros after ReLU).
    w1p = jnp.zeros((H, W), jnp.float32).at[:, :H].set(p["w1"])
    b1p = jnp.zeros((1, W), jnp.float32).at[:, :H].set(p["b1"])

    # Fused stream-1: [fcV1 | fcA1] -> s1 cols 0:H = v1, cols H:2H = a1.
    ws1p = jnp.zeros((W, W), jnp.float32)
    ws1p = ws1p.at[:H, :H].set(p["wv1"]).at[:H, H:2 * H].set(p["wa1"])
    bs1p = jnp.zeros((1, W), jnp.float32)
    bs1p = bs1p.at[:, :H].set(p["bv1"]).at[:, H:2 * H].set(p["ba1"])

    # Fused stream-2: top H rows broadcast fcV2 over actions, next H rows = centered fcA2.
    ws2p = jnp.zeros((W, W), jnp.float32)
    ws2p = ws2p.at[:H, :NA].set(jnp.tile(p["wv2"], (1, NA)))
    ws2p = ws2p.at[H:2 * H, :NA].set(wa2c)
    bs2p = jnp.zeros((1, W), jnp.float32).at[:, :NA].set(p["bv2"] + ba2c)

    w_slab = jnp.concatenate([w1p, ws1p, ws2p], axis=0)        # (H + 2W, W)
    b_slab = jnp.concatenate([b1p, bs1p, bs2p], axis=0)        # (3, W)
    return w_slab, b_slab


# ----------------------------------------------------------------------------
# Synthetic parameters + pure-JAX reference (unfused) for correctness checking
# ----------------------------------------------------------------------------
def init_params(key, num_states, num_actions):
    del num_states  # only used by the (unused) LSTM in the reference module
    ks = jax.random.split(key, 10)

    def lin(kw, kb, fan_in, fan_out):
        bound = 1.0 / jnp.sqrt(jnp.float32(fan_in))
        w = jax.random.uniform(kw, (fan_in, fan_out), jnp.float32, -bound, bound)
        b = jax.random.uniform(kb, (1, fan_out), jnp.float32, -bound, bound)
        return w, b

    w1, b1 = lin(ks[0], ks[1], HIDDEN, HIDDEN)          # fc1:  Linear(32, 32)
    wv1, bv1 = lin(ks[2], ks[3], HIDDEN, HIDDEN)        # fcV1: Linear(32, 32)
    wa1, ba1 = lin(ks[4], ks[5], HIDDEN, HIDDEN)        # fcA1: Linear(32, 32)
    wv2, bv2 = lin(ks[6], ks[7], HIDDEN, 1)             # fcV2: Linear(32, 1)
    wa2, ba2 = lin(ks[8], ks[9], HIDDEN, num_actions)   # fcA2: Linear(32, num_actions)
    return dict(w1=w1, b1=b1, wv1=wv1, bv1=bv1, wa1=wa1, ba1=ba1,
                wv2=wv2, bv2=bv2, wa2=wa2, ba2=ba2)


def reference_forward(x, p):
    h = jnp.maximum(x @ p["w1"] + p["b1"], 0.0)
    V = (h @ p["wv1"] + p["bv1"]) @ p["wv2"] + p["bv2"]
    A = (h @ p["wa1"] + p["ba1"]) @ p["wa2"] + p["ba2"]
    return V + (A - A.mean(axis=1, keepdims=True))


if __name__ == "__main__":
    key = jax.random.PRNGKey(0)
    k_params, k_x = jax.random.split(key)

    batch = 8
    num_states = 32      # unused by forward (LSTM is dead code)
    num_actions = 4

    params = init_params(k_params, num_states, num_actions)
    packed = pack_params(params, num_actions)

    # fc1 is Linear(32, 32) applied directly to x, so x is (B, 32).
    x = jax.random.normal(k_x, (batch, HIDDEN), jnp.float32)

    out = advantage_finance_net_forward(x, packed, num_actions)
    out = jax.block_until_ready(out)

    ref = reference_forward(x, params)
    assert out.shape == (batch, num_actions)
    assert jnp.allclose(out, ref, atol=1e-5, rtol=1e-5), "mismatch vs reference"

    print("KERNEL_OK")
</pallas_src>

<mosaic_0001>
module attributes {stable_mosaic.version = 11 : i64} {
  func.func @dueling_kernel(%arg0: i32, %arg1: memref<8x32xf32, #tpu.memory_space<vmem>>, %arg2: memref<288x128xf32, #tpu.memory_space<vmem>>, %arg3: memref<3x128xf32, #tpu.memory_space<vmem>>, %arg4: memref<8x4xf32, #tpu.memory_space<vmem>>) attributes {dimension_semantics = [#tpu.dimension_semantics<parallel>], iteration_bounds = array<i64: 1>, scalar_prefetch = 0 : i64, scratch_operands = 0 : i64, tpu.core_type = #tpu.core_type<tc>, window_params = [{transform_indices = @transform_0, window_bounds = array<i64: 8, 32>}, {pipeline_mode = #tpu.pipeline_mode<synchronous>, transform_indices = @transform_1, window_bounds = array<i64: 288, 128>}, {pipeline_mode = #tpu.pipeline_mode<synchronous>, transform_indices = @transform_2, window_bounds = array<i64: 3, 128>}, {transform_indices = @transform_3, window_bounds = array<i64: 8, 4>}]} {
    %c0 = arith.constant 0 : index
    %c0_0 = arith.constant 0 : index
    %0 = vector.load %arg1[%c0, %c0_0] : memref<8x32xf32, #tpu.memory_space<vmem>>, vector<8x32xf32>
    %c0_1 = arith.constant 0 : index
    %c0_2 = arith.constant 0 : index
    %1 = vector.load %arg2[%c0_1, %c0_2] : memref<288x128xf32, #tpu.memory_space<vmem>>, vector<32x128xf32>
    %c32 = arith.constant 32 : index
    %c0_3 = arith.constant 0 : index
    %2 = vector.load %arg2[%c32, %c0_3] : memref<288x128xf32, #tpu.memory_space<vmem>>, vector<128x128xf32>
    %c160 = arith.constant 160 : index
    %c0_4 = arith.constant 0 : index
    %3 = vector.load %arg2[%c160, %c0_4] : memref<288x128xf32, #tpu.memory_space<vmem>>, vector<128x128xf32>
    %c0_5 = arith.constant 0 : index
    %c0_6 = arith.constant 0 : index
    %4 = vector.load %arg3[%c0_5, %c0_6] : memref<3x128xf32, #tpu.memory_space<vmem>>, vector<1x128xf32>
    %c1 = arith.constant 1 : index
    %c0_7 = arith.constant 0 : index
    %5 = vector.load %arg3[%c1, %c0_7] : memref<3x128xf32, #tpu.memory_space<vmem>>, vector<1x128xf32>
    %c2 = arith.constant 2 : index
    %c0_8 = arith.constant 0 : index
    %6 = vector.load %arg3[%c2, %c0_8] : memref<3x128xf32, #tpu.memory_space<vmem>>, vector<1x128xf32>
    %cst = arith.constant dense<0.000000e+00> : vector<8x128xf32>
    %7 = tpu.matmul %0, %1, %cst {dimension_numbers = #tpu.dot_dimension_numbers<[1], [0], [0], [1], [0, 0, 1, 1], [], []>} : vector<8x32xf32>, vector<32x128xf32>, vector<8x128xf32> -> vector<8x128xf32>
    %8 = vector.broadcast %4 : vector<1x128xf32> to vector<8x128xf32>
    %9 = arith.addf %7, %8 : vector<8x128xf32>
    %cst_9 = arith.constant 0.000000e+00 : f32
    %10 = vector.broadcast %cst_9 : f32 to vector<8x128xf32>
    %11 = arith.maximumf %9, %10 : vector<8x128xf32>
    %cst_10 = arith.constant dense<0.000000e+00> : vector<8x128xf32>
    %12 = tpu.matmul %11, %2, %cst_10 {dimension_numbers = #tpu.dot_dimension_numbers<[1], [0], [0], [1], [0, 0, 1, 1], [], []>} : vector<8x128xf32>, vector<128x128xf32>, vector<8x128xf32> -> vector<8x128xf32>
    %13 = vector.broadcast %5 : vector<1x128xf32> to vector<8x128xf32>
    %14 = arith.addf %12, %13 : vector<8x128xf32>
    %cst_11 = arith.constant dense<0.000000e+00> : vector<8x128xf32>
    %15 = tpu.matmul %14, %3, %cst_11 {dimension_numbers = #tpu.dot_dimension_numbers<[1], [0], [0], [1], [0, 0, 1, 1], [], []>} : vector<8x128xf32>, vector<128x128xf32>, vector<8x128xf32> -> vector<8x128xf32>
    %16 = vector.broadcast %6 : vector<1x128xf32> to vector<8x128xf32>
    %17 = arith.addf %15, %16 : vector<8x128xf32>
    %18 = vector.extract_strided_slice %17 {offsets = [0, 0], sizes = [8, 4], strides = [1, 1]} : vector<8x128xf32> to vector<8x4xf32>
    %c0_12 = arith.constant 0 : index
    %c0_13 = arith.constant 0 : index
    %19 = vector.load %arg4[%c0_12, %c0_13] : memref<8x4xf32, #tpu.memory_space<vmem>>, vector<8x4xf32>
    tpu.vector_store %arg4[%c0_12, %c0_13], %18 {strides = array<i32>} : memref<8x4xf32, #tpu.memory_space<vmem>>, vector<8x4xf32>,
    return
  }
  func.func @transform_0(%arg0: i32) -> (i32, i32) {
    %c0_i32 = arith.constant 0 : i32
    %c0_i32_0 = arith.constant 0 : i32
    return %arg0, %c0_i32 : i32, i32
  }
  func.func @transform_1(%arg0: i32) -> (i32, i32) {
    %c0_i32 = arith.constant 0 : i32
    %c0_i32_0 = arith.constant 0 : i32
    %c0_i32_1 = arith.constant 0 : i32
    return %c0_i32, %c0_i32_0 : i32, i32
  }
  func.func @transform_2(%arg0: i32) -> (i32, i32) {
    %c0_i32 = arith.constant 0 : i32
    %c0_i32_0 = arith.constant 0 : i32
    %c0_i32_1 = arith.constant 0 : i32
    return %c0_i32, %c0_i32_0 : i32, i32
  }
  func.func @transform_3(%arg0: i32) -> (i32, i32) {
    %c0_i32 = arith.constant 0 : i32
    %c0_i32_0 = arith.constant 0 : i32
    return %arg0, %c0_i32 : i32, i32
  }
}

</mosaic_0001>

<llo_original>
// kernel: tpu_custom_call.1
$region0: #{tpu_custom_call.1}
  #allocation0 [shape = 'u32[]', space=smem, size = 0x4, offset = 0x4, fixed_abs, tag = 'smem constant byte address 0x4 - core index']
  #allocation1 [shape = 'u32[144,128]{1,0:T(1,128)}', space=vmem, size = 0x12000, scoped, tag = 'internal scratch']
  %s0 = inlined_call_operand.hbm [shape: f32[8,32], index: 0, kind: input, shape index: {}]
  %s1 = inlined_call_operand.hbm [shape: f32[288,128], index: 1, kind: input, shape index: {}]
  %s2 = inlined_call_operand.vmem [shape: f32[3,128], index: 2, kind: input, shape index: {}]
  %s3 = inlined_call_operand.vmem [shape: f32[8,4], index: 3, kind: output, shape index: {}]
  %s4 = sld [smem:[#allocation0]]
  $region30: #{tpu_custom_call.1} parent=0
    _
  %s6 = ssub.s32 1, %s4
  %s7 = scalar_select 0, %s6, %s4
  $region1: #{tpu_custom_call.1} parent=0
    #allocation2 [shape = 'u8[4096]{0}', space=vmem, size = 0x1000, scoped, tag = 'input window, operand 0, single buffered']
    #allocation3 [shape = 's32[1]{0}', space=sflag, size = 0x4, scoped, tag = 'scoped memory for tpu_custom_call.1']
    #allocation4 [shape = 'u8[147456]{0}', space=vmem, size = 0x24000, scoped, tag = 'input window, operand 1, single buffered']
    #allocation5 [shape = 's32[1]{0}', space=sflag, size = 0x4, scoped, tag = 'scoped memory for tpu_custom_call.1']
    %8 = vsyncpa [#allocation3], 0
    %9 = vsyncpa [#allocation5], 0
    // Predicated region
    $region2: #{tpu_custom_call.1} parent=1 // pred_check
      _
    $region3: #{tpu_custom_call.1} parent=1 // pred_check_branch
      %11 = sbr.rel (0) target = $region5
    $region4: #{tpu_custom_call.1} parent=1 // pred_region
      %s13 = ssub.s32 128, 128
      %14 = vsyncadd [#allocation3], %s13
      %s16 = sshll.u32 [#allocation2], 4
      %s17 = int_to_ptr.vmem [resolvable:$true] %s16
      %19 = dma.hbm_to_vmem [thread:$0]  %s0, 128, %s17, [#allocation3]
    $region5: #{tpu_custom_call.1} parent=1 // pred_fallthru
      _
    // Predicated region
    $region6: #{tpu_custom_call.1} parent=1 // pred_check
      _
    $region7: #{tpu_custom_call.1} parent=1 // pred_check_branch
      %21 = sbr.rel (0) target = $region9
    $region8: #{tpu_custom_call.1} parent=1 // pred_region
      %s23 = ssub.s32 4608, 4608
      %24 = vsyncadd [#allocation5], %s23
      %s25 = sshll.u32 [#allocation4], 4
      %s26 = int_to_ptr.vmem [resolvable:$true] %s25
      %31 = dma.hbm_to_vmem [thread:$0]  %s1, 4608, %s26, [#allocation5], 128, 128, 8
    $region9: #{tpu_custom_call.1} parent=1 // pred_fallthru
      _
    // Predicated region
    $region10: #{tpu_custom_call.1} parent=1 // pred_check
      _
    $region11: #{tpu_custom_call.1} parent=1 // pred_check_branch
      %33 = sbr.rel (0) target = $region13
    $region12: #{tpu_custom_call.1} parent=1 // pred_region
      _
    $region13: #{tpu_custom_call.1} parent=1 // pred_fallthru
      _
    // Predicated region
    $region14: #{tpu_custom_call.1} parent=1 // pred_check
      _
    $region15: #{tpu_custom_call.1} parent=1 // pred_check_branch
      %35 = sbr.rel (0) target = $region17
    $region16: #{tpu_custom_call.1} parent=1 // pred_region
      %36 = dma.done [#allocation3], 128
    $region17: #{tpu_custom_call.1} parent=1 // pred_fallthru
      _
    // Predicated region
    $region18: #{tpu_custom_call.1} parent=1 // pred_check
      _
    $region19: #{tpu_custom_call.1} parent=1 // pred_check_branch
      %38 = sbr.rel (0) target = $region21
    $region20: #{tpu_custom_call.1} parent=1 // pred_region
      %39 = dma.done [#allocation5], 4608
    $region21: #{tpu_custom_call.1} parent=1 // pred_fallthru
      _
    %v40 = vld [vmem:[#allocation2] sm:$0xff]
    %v41 = vld [vmem:[#allocation4] sm:$0xff]
    %v42 = vld [vmem:[#allocation4 + $0x8] sm:$0xff]
    %v43 = vld [vmem:[#allocation4 + $0x10] sm:$0xff]
    %v44 = vld [vmem:[#allocation4 + $0x18] sm:$0xff]
    %v45 = vld [vmem:[#allocation4 + $0x20] sm:$0xff]
    %v46 = vld [vmem:[#allocation4 + $0x28] sm:$0xff]
    %v47 = vld [vmem:[#allocation4 + $0x30] sm:$0xff]
    %v48 = vld [vmem:[#allocation4 + $0x38] sm:$0xff]
    %v49 = vld [vmem:[#allocation4 + $0x40] sm:$0xff]
    %v50 = vld [vmem:[#allocation4 + $0x48] sm:$0xff]
    %v51 = vld [vmem:[#allocation4 + $0x50] sm:$0xff]
    %v52 = vld [vmem:[#allocation4 + $0x58] sm:$0xff]
    %v53 = vld [vmem:[#allocation4 + $0x60] sm:$0xff]
    %v54 = vld [vmem:[#allocation4 + $0x68] sm:$0xff]
    %v55 = vld [vmem:[#allocation4 + $0x70] sm:$0xff]
    %v56 = vld [vmem:[#allocation4 + $0x78] sm:$0xff]
    %v57 = vld [vmem:[#allocation4 + $0x80] sm:$0xff]
    %v58 = vld [vmem:[#allocation4 + $0x88] sm:$0xff]
    %v59 = vld [vmem:[#allocation4 + $0x90] sm:$0xff]
    %v60 = vld [vmem:[#allocation4 + $0x98] sm:$0xff]
    %v61 = vld [vmem:[#allocation4 + $0xa0] sm:$0xff]
    %v62 = vld [vmem:[#allocation4 + $0xa8] sm:$0xff]
    %v63 = vld [vmem:[#allocation4 + $0xb0] sm:$0xff]
    %v64 = vld [vmem:[#allocation4 + $0xb8] sm:$0xff]
    %v65 = vld [vmem:[#allocation4 + $0xc0] sm:$0xff]
    %v66 = vld [vmem:[#allocation4 + $0xc8] sm:$0xff]
    %v67 = vld [vmem:[#allocation4 + $0xd0] sm:$0xff]
    %v68 = vld [vmem:[#allocation4 + $0xd8] sm:$0xff]
    %v69 = vld [vmem:[#allocation4 + $0xe0] sm:$0xff]
    %v70 = vld [vmem:[#allocation4 + $0xe8] sm:$0xff]
    %v71 = vld [vmem:[#allocation4 + $0xf0] sm:$0xff]
    %v72 = vld [vmem:[#allocation4 + $0xf8] sm:$0xff]
    %v73 = vld [vmem:[#allocation4 + $0x100] sm:$0xff]
    %v74 = vld [vmem:[#allocation4 + $0x108] sm:$0xff]
    %v75 = vld [vmem:[#allocation4 + $0x110] sm:$0xff]
    %v76 = vld [vmem:[#allocation4 + $0x118] sm:$0xff]
    %v77 = vld [vmem:[%s2] sm:$0x1]
    %v78 = vld [vmem:[%s2 + $0x1] sm:$0x1]
    %v79 = vld [vmem:[%s2 + $0x2] sm:$0x1]
    %v80 = vlaneseq
    %v81 = vshrl.u32 %v80, 7
    %v82 = vsub.s32 0, %v81
    %v83 = vrot.slane %v77, %v82
    %vm84 = vcmask 261120
    %v86 = vsel %vm84, %v40, 0
    %88 = vmatprep.subr.mxu0 0.0
    %89 = vmatpush1.msra.mxu0 %v41
    %90 = vmatprep.subr.mxu0 0.0
    %91 = vmatpush1.msra.mxu0 %v42
    %92 = vmatprep.subr.mxu0 0.0
    %93 = vmatpush1.msra.mxu0 %v43
    %94 = vmatprep.subr.mxu0 0.0
    %95 = vmatpush1.msra.mxu0 %v44
    %96 = vmatprep.subr.mxu0 0.0
    %97 = vmatpush1.msra.mxu0 0.0
    %98 = vmatprep.subr.mxu0 0.0
    %99 = vmatpush1.msra.mxu0 0.0
    %100 = vmatprep.subr.mxu0 0.0
    %101 = vmatpush1.msra.mxu0 0.0
    %102 = vmatprep.subr.mxu0 0.0
    %103 = vmatpush1.msra.mxu0 0.0
    %104 = vmatprep.subr.mxu0 0.0
    %105 = vmatpush1.msra.mxu0 0.0
    %106 = vmatprep.subr.mxu0 0.0
    %107 = vmatpush1.msra.mxu0 0.0
    %108 = vmatprep.subr.mxu0 0.0
    %109 = vmatpush1.msra.mxu0 0.0
    %110 = vmatprep.subr.mxu0 0.0
    %111 = vmatpush1.msra.mxu0 0.0
    %112 = vmatprep.subr.mxu0 0.0
    %113 = vmatpush1.msra.mxu0 0.0
    %114 = vmatprep.subr.mxu0 0.0
    %115 = vmatpush1.msra.mxu0 0.0
    %116 = vmatprep.subr.mxu0 0.0
    %117 = vmatpush1.msra.mxu0 0.0
    %118 = vmatprep.subr.mxu0 0.0
    %119 = vmatpush1.msra.mxu0 0.0
    %120 = vmatprep.subr.mxu0 0.0
    %121 = vmatpush1.msra.mxu0 0.0
    %122 = vmatprep.subr.mxu0 0.0
    %123 = vmatpush1.msra.mxu0 0.0
    %124 = vmatprep.subr.mxu0 0.0
    %125 = vmatpush1.msra.mxu0 0.0
    %126 = vmatprep.subr.mxu0 0.0
    %127 = vmatpush1.msra.mxu0 0.0
    %128 = vmatprep.subr.mxu0 0.0
    %129 = vmatpush1.msra.mxu0 0.0
    %130 = vmatprep.subr.mxu0 0.0
    %131 = vmatpush1.msra.mxu0 0.0
    %132 = vmatprep.subr.mxu0 0.0
    %133 = vmatpush1.msra.mxu0 0.0
    %134 = vmatprep.subr.mxu0 0.0
    %135 = vmatpush1.msra.mxu0 0.0
    %136 = vmatprep.subr.mxu0 0.0
    %137 = vmatpush1.msra.mxu0 0.0
    %138 = vmatprep.subr.mxu0 0.0
    %139 = vmatpush1.msra.mxu0 0.0
    %140 = vmatprep.subr.mxu0 0.0
    %141 = vmatpush1.msra.mxu0 0.0
    %142 = vmatprep.subr.mxu0 0.0
    %143 = vmatpush1.msra.mxu0 0.0
    %144 = vmatprep.subr.mxu0 0.0
    %145 = vmatpush1.msra.mxu0 0.0
    %146 = vmatprep.subr.mxu0 0.0
    %147 = vmatpush1.msra.mxu0 0.0
    %148 = vmatprep.subr.mxu0 0.0
    %149 = vmatpush1.msra.mxu0 0.0
    %150 = vmatprep.subr.mxu0 0.0
    %151 = vmatpush1.msra.mxu0 0.0
    %152 = vmatprep.mubr.f32.mxu0 0.0
    %153 = vmatmul.mubr.f32.gmra.mrb[0].mxu0 %v86
    %v154 = vpop.f32.mrb[0].mxu0
    %v155 = vadd.f32 %v83, %v154
    %v156 = vpop.f32.mrb[0].mxu0
    %157 = vdwg.mxu0
    %v158 = vmax.f32 %v155, 0.0
    %v159 = vlaneseq
    %v160 = vshrl.u32 %v159, 7
    %v161 = vsub.s32 0, %v160
    %v162 = vrot.slane %v78, %v161
    %163 = vmatprep.subr.mxu0 0.0
    %164 = vmatpush1.msra.mxu0 %v45
    %165 = vmatprep.subr.mxu0 0.0
    %166 = vmatpush1.msra.mxu0 %v46
    %167 = vmatprep.subr.mxu0 0.0
    %168 = vmatpush1.msra.mxu0 %v47
    %169 = vmatprep.subr.mxu0 0.0
    %170 = vmatpush1.msra.mxu0 %v48
    %171 = vmatprep.subr.mxu0 0.0
    %172 = vmatpush1.msra.mxu0 %v49
    %173 = vmatprep.subr.mxu0 0.0
    %174 = vmatpush1.msra.mxu0 %v50
    %175 = vmatprep.subr.mxu0 0.0
    %176 = vmatpush1.msra.mxu0 %v51
    %177 = vmatprep.subr.mxu0 0.0
    %178 = vmatpush1.msra.mxu0 %v52
    %179 = vmatprep.subr.mxu0 0.0
    %180 = vmatpush1.msra.mxu0 %v53
    %181 = vmatprep.subr.mxu0 0.0
    %182 = vmatpush1.msra.mxu0 %v54
    %183 = vmatprep.subr.mxu0 0.0
    %184 = vmatpush1.msra.mxu0 %v55
    %185 = vmatprep.subr.mxu0 0.0
    %186 = vmatpush1.msra.mxu0 %v56
    %187 = vmatprep.subr.mxu0 0.0
    %188 = vmatpush1.msra.mxu0 %v57
    %189 = vmatprep.subr.mxu0 0.0
    %190 = vmatpush1.msra.mxu0 %v58
    %191 = vmatprep.subr.mxu0 0.0
    %192 = vmatpush1.msra.mxu0 %v59
    %193 = vmatprep.subr.mxu0 0.0
    %194 = vmatpush1.msra.mxu0 %v60
    %195 = vmatprep.subr.mxu0 0.0
    %196 = vmatpush1.msra.mxu0 0.0
    %197 = vmatprep.subr.mxu0 0.0
    %198 = vmatpush1.msra.mxu0 0.0
    %199 = vmatprep.subr.mxu0 0.0
    %200 = vmatpush1.msra.mxu0 0.0
    %201 = vmatprep.subr.mxu0 0.0
    %202 = vmatpush1.msra.mxu0 0.0
    %203 = vmatprep.subr.mxu0 0.0
    %204 = vmatpush1.msra.mxu0 0.0
    %205 = vmatprep.subr.mxu0 0.0
    %206 = vmatpush1.msra.mxu0 0.0
    %207 = vmatprep.subr.mxu0 0.0
    %208 = vmatpush1.msra.mxu0 0.0
    %209 = vmatprep.subr.mxu0 0.0
    %210 = vmatpush1.msra.mxu0 0.0
    %211 = vmatprep.subr.mxu0 0.0
    %212 = vmatpush1.msra.mxu0 0.0
    %213 = vmatprep.subr.mxu0 0.0
    %214 = vmatpush1.msra.mxu0 0.0
    %215 = vmatprep.subr.mxu0 0.0
    %216 = vmatpush1.msra.mxu0 0.0
    %217 = vmatprep.subr.mxu0 0.0
    %218 = vmatpush1.msra.mxu0 0.0
    %219 = vmatprep.subr.mxu0 0.0
    %220 = vmatpush1.msra.mxu0 0.0
    %221 = vmatprep.subr.mxu0 0.0
    %222 = vmatpush1.msra.mxu0 0.0
    %223 = vmatprep.subr.mxu0 0.0
    %224 = vmatpush1.msra.mxu0 0.0
    %225 = vmatprep.subr.mxu0 0.0
    %226 = vmatpush1.msra.mxu0 0.0
    %227 = vmatprep.mubr.f32.mxu0 0.0
    %228 = vmatmul.mubr.f32.gmra.mrb[0].mxu0 %v158
    %v229 = vpop.f32.mrb[0].mxu0
    %v230 = vadd.f32 %v162, %v229
    %v231 = vpop.f32.mrb[0].mxu0
    %232 = vdwg.mxu0
    %v233 = vlaneseq
    %v234 = vshrl.u32 %v233, 7
    %v235 = vsub.s32 0, %v234
    %v236 = vrot.slane %v79, %v235
    %237 = vmatprep.subr.mxu0 0.0
    %238 = vmatpush1.msra.mxu0 %v61
    %239 = vmatprep.subr.mxu0 0.0
    %240 = vmatpush1.msra.mxu0 %v62
    %241 = vmatprep.subr.mxu0 0.0
    %242 = vmatpush1.msra.mxu0 %v63
    %243 = vmatprep.subr.mxu0 0.0
    %244 = vmatpush1.msra.mxu0 %v64
    %245 = vmatprep.subr.mxu0 0.0
    %246 = vmatpush1.msra.mxu0 %v65
    %247 = vmatprep.subr.mxu0 0.0
    %248 = vmatpush1.msra.mxu0 %v66
    %249 = vmatprep.subr.mxu0 0.0
    %250 = vmatpush1.msra.mxu0 %v67
    %251 = vmatprep.subr.mxu0 0.0
    %252 = vmatpush1.msra.mxu0 %v68
    %253 = vmatprep.subr.mxu0 0.0
    %254 = vmatpush1.msra.mxu0 %v69
    %255 = vmatprep.subr.mxu0 0.0
    %256 = vmatpush1.msra.mxu0 %v70
    %257 = vmatprep.subr.mxu0 0.0
    %258 = vmatpush1.msra.mxu0 %v71
    %259 = vmatprep.subr.mxu0 0.0
    %260 = vmatpush1.msra.mxu0 %v72
    %261 = vmatprep.subr.mxu0 0.0
    %262 = vmatpush1.msra.mxu0 %v73
    %263 = vmatprep.subr.mxu0 0.0
    %264 = vmatpush1.msra.mxu0 %v74
    %265 = vmatprep.subr.mxu0 0.0
    %266 = vmatpush1.msra.mxu0 %v75
    %267 = vmatprep.subr.mxu0 0.0
    %268 = vmatpush1.msra.mxu0 %v76
    %269 = vmatprep.subr.mxu0 0.0
    %270 = vmatpush1.msra.mxu0 0.0
    %271 = vmatprep.subr.mxu0 0.0
    %272 = vmatpush1.msra.mxu0 0.0
    %273 = vmatprep.subr.mxu0 0.0
    %274 = vmatpush1.msra.mxu0 0.0
    %275 = vmatprep.subr.mxu0 0.0
    %276 = vmatpush1.msra.mxu0 0.0
    %277 = vmatprep.subr.mxu0 0.0
    %278 = vmatpush1.msra.mxu0 0.0
    %279 = vmatprep.subr.mxu0 0.0
    %280 = vmatpush1.msra.mxu0 0.0
    %281 = vmatprep.subr.mxu0 0.0
    %282 = vmatpush1.msra.mxu0 0.0
    %283 = vmatprep.subr.mxu0 0.0
    %284 = vmatpush1.msra.mxu0 0.0
    %285 = vmatprep.subr.mxu0 0.0
    %286 = vmatpush1.msra.mxu0 0.0
    %287 = vmatprep.subr.mxu0 0.0
    %288 = vmatpush1.msra.mxu0 0.0
    %289 = vmatprep.subr.mxu0 0.0
    %290 = vmatpush1.msra.mxu0 0.0
    %291 = vmatprep.subr.mxu0 0.0
    %292 = vmatpush1.msra.mxu0 0.0
    %293 = vmatprep.subr.mxu0 0.0
    %294 = vmatpush1.msra.mxu0 0.0
    %295 = vmatprep.subr.mxu0 0.0
    %296 = vmatpush1.msra.mxu0 0.0
    %297 = vmatprep.subr.mxu0 0.0
    %298 = vmatpush1.msra.mxu0 0.0
    %299 = vmatprep.subr.mxu0 0.0
    %300 = vmatpush1.msra.mxu0 0.0
    %301 = vmatprep.mubr.f32.mxu0 0.0
    %302 = vmatmul.mubr.f32.gmra.mrb[0].mxu0 %v230
    %v303 = vpop.f32.mrb[0].mxu0
    %v304 = vadd.f32 %v236, %v303
    %v305 = vpop.f32.mrb[0].mxu0
    %306 = vdwg.mxu0
    %vm307 = vcmask 31744
    %308 = vst.msk [vmem:[%s3] sm:$0xff] %vm307, %v304
    // Predicated region
    $region22: #{tpu_custom_call.1} parent=1 // pred_check
      _
    $region23: #{tpu_custom_call.1} parent=1 // pred_check_branch
      %310 = sbr.rel (0) target = $region25
    $region24: #{tpu_custom_call.1} parent=1 // pred_region
      _
    $region25: #{tpu_custom_call.1} parent=1 // pred_fallthru
      _
    // Predicated region
    $region26: #{tpu_custom_call.1} parent=1 // pred_check
      _
    $region27: #{tpu_custom_call.1} parent=1 // pred_check_branch
      %312 = sbr.rel (0) target = $region29
    $region28: #{tpu_custom_call.1} parent=1 // pred_region
      _
    $region29: #{tpu_custom_call.1} parent=1 // pred_fallthru
      _
    %313 = vsyncpa [#allocation3], 1
    %314 = vsyncpa [#allocation5], 1

</llo_original>
